<compile_context>
chip_gen: v5e
topology: v5e:2x2
jax: 0.10.0
libtpu: 0.0.40
codegen_flags: <defaults>
</compile_context>

<pallas_src>
import functools

import jax
import jax.numpy as jnp
from jax.experimental import pallas as pl
from jax.experimental.pallas import tpu as pltpu


def _round_up(x: int, m: int) -> int:
    return ((x + m - 1) // m) * m


def _atomwise_reduce_kernel(e_ref, idx_ref, out_ref, acc_ref, *, g_sub, g_lane):
    # e_ref:   [1, TILE_NA] float32   (padding atoms carry e == 0.0)
    # idx_ref: [1, TILE_NA] int32     (padding atoms carry idx == 0, harmless)
    # out_ref: [1, G_lane]  float32   (lane-dense final energies)
    # acc_ref: [G_sub, 1]   float32   (VMEM-resident accumulator)
    step = pl.program_id(0)

    @pl.when(step == 0)
    def _init():
        acc_ref[...] = jnp.zeros_like(acc_ref)

    e = e_ref[...]                                   # [1, T]
    idx = idx_ref[...]                               # [1, T]
    tile = e.shape[1]

    # Compare every atom lane against every group row (groups on sublanes).
    gids = jax.lax.broadcasted_iota(jnp.int32, (g_sub, tile), 0)   # [G_sub, T]
    mask = (idx == gids)                                           # bcast [1,T]
    contrib = jnp.where(mask, e, jnp.zeros_like(e))                # [G_sub, T]
    acc_ref[...] += jnp.sum(contrib, axis=1, keepdims=True)        # [G_sub, 1]

    @pl.when(step == pl.num_programs(0) - 1)
    def _finalize():
        acc = acc_ref[...]                                         # [G_sub, 1]
        # Scatter the sublane-axis accumulator onto the lane axis:
        # out[0, g] = acc[g, 0] for g < G_sub, else 0.  Implemented as a
        # broadcast-multiply with a diagonal selector + sublane reduce, which
        # lowers cleanly (no explicit transpose).
        rows = jax.lax.broadcasted_iota(jnp.int32, (g_sub, g_lane), 0)
        cols = jax.lax.broadcasted_iota(jnp.int32, (g_sub, g_lane), 1)
        sel = (rows == cols).astype(jnp.float32)                   # [G_sub, G_lane]
        scattered = acc * sel                                      # lane bcast of acc
        out_ref[...] = jnp.sum(scattered, axis=0, keepdims=True)   # [1, G_lane]


def atomwise_reduce(
    data: dict,
    output_key: str = "energy",
    per_atom_output: bool = False,
    aggregation_mode: str = "sum",
) -> dict:
    """JAX/Pallas port of AtomwiseReduce.forward.

    Expects in `data`:
      'atomic_energy' : [n_atoms] float
      'n_atoms'       : [n_images] int (per-image atom counts; gives n_images)
      'image_idx'     : [n_atoms] int (optional; defaults to a single image)
    """
    atomic_energy = jnp.asarray(data["atomic_energy"], dtype=jnp.float32)
    n_atoms_total = int(atomic_energy.shape[0])

    has_image_idx = data.get("image_idx", None) is not None
    if has_image_idx:
        image_idx = jnp.asarray(data["image_idx"], dtype=jnp.int32)
        n_images = int(data["n_atoms"].shape[0])
    else:
        image_idx = jnp.zeros((n_atoms_total,), dtype=jnp.int32)
        n_images = 1

    # ----- shapes / tiling --------------------------------------------------
    g_sub = max(_round_up(n_images, 8), 8)        # groups on sublanes (compute)
    g_lane = max(_round_up(n_images, 128), 128)   # groups on lanes (output)

    # Coarse atom bucketing (limits recompiles); raise the quantum (e.g. 8192
    # or next-pow2) in pipelines where n_atoms varies wildly per batch.
    pad_multiple = 512
    na_pad = max(_round_up(n_atoms_total, pad_multiple), pad_multiple)

    # Atom tile: largest multiple of 512 that divides na_pad and keeps the
    # per-step [g_sub, tile] intermediates within a VMEM budget that is safe
    # on every generation (v7x only has 64 MiB of VMEM per TensorCore).
    intermediate_budget = 8 * 1024 * 1024          # bytes for live [g_sub, tile] arrays
    max_tile = intermediate_budget // (16 * g_sub) # ~4 live f32 [g_sub, tile] arrays
    max_tile = max(512, min(8192, (max_tile // 512) * 512))
    tile_na = 512
    for cand in range(min(max_tile, na_pad), 511, -512):
        if na_pad % cand == 0:
            tile_na = cand
            break
    n_tiles = na_pad // tile_na

    # Single jnp.pad per array; zero-padded energies contribute nothing to any
    # group, padded indices default to 0 (valid group, zero contribution).
    pad = na_pad - n_atoms_total
    e2 = jnp.pad(atomic_energy, (0, pad)).reshape(1, na_pad)
    i2 = jnp.pad(image_idx, (0, pad)).reshape(1, na_pad)

    # Explicit VMEM budget with headroom (prevents silent spill on v7x).
    vmem_est = (
        2 * 2 * tile_na * 4            # two input streams, double buffered
        + 16 * g_sub * tile_na         # live [g_sub, tile] f32 intermediates
        + 2 * g_sub * g_lane * 4       # finalize selector / scatter
        + 2 * g_lane * 4               # output block
        + (1 << 20)                    # slack
    )
    vmem_limit = int(min(48 << 20, max(16 << 20, vmem_est)))

    kernel = functools.partial(_atomwise_reduce_kernel, g_sub=g_sub, g_lane=g_lane)

    out = pl.pallas_call(
        kernel,
        out_shape=jax.ShapeDtypeStruct((1, g_lane), jnp.float32),
        grid=(n_tiles,),
        in_specs=[
            pl.BlockSpec((1, tile_na), lambda t: (0, t)),
            pl.BlockSpec((1, tile_na), lambda t: (0, t)),
        ],
        out_specs=pl.BlockSpec((1, g_lane), lambda t: (0, 0)),
        scratch_shapes=[pltpu.VMEM((g_sub, 1), jnp.float32)],
        compiler_params=pltpu.CompilerParams(
            dimension_semantics=("arbitrary",),
            vmem_limit_bytes=vmem_limit,
        ),
    )(e2, i2)

    energy = out[0, :n_images]                     # [n_images]

    if aggregation_mode == "mean":
        # scatter_mean: divide by per-image atom counts.  In the Curator data
        # pipeline image_idx = repeat(arange(n_images), n_atoms), so
        # data['n_atoms'] already holds exactly these counts -- no need to
        # recount inside the kernel.
        if has_image_idx:
            counts = jnp.asarray(data["n_atoms"], dtype=jnp.float32)
        else:
            counts = jnp.full((1,), float(n_atoms_total), dtype=jnp.float32)
        energy = energy / jnp.maximum(counts, 1.0)

    result = dict(data)
    result[output_key] = energy
    if per_atom_output:
        result[output_key + "_per_atom"] = atomic_energy
    return result


def _reference(atomic_energy, image_idx, n_images, mode):
    sums = jax.ops.segment_sum(atomic_energy, image_idx, num_segments=n_images)
    if mode == "mean":
        counts = jax.ops.segment_sum(
            jnp.ones_like(atomic_energy), image_idx, num_segments=n_images
        )
        return sums / jnp.maximum(counts, 1.0)
    return sums


if __name__ == "__main__":
    key = jax.random.PRNGKey(0)

    # ---- Small batch: 2 images with 5 and 3 atoms (8 atoms total) ----------
    n_atoms_per_image = jnp.array([5, 3], dtype=jnp.int32)          # n_images = 2
    n_atoms_total = int(n_atoms_per_image.sum())
    atomic_energy = jax.random.normal(key, (n_atoms_total,), dtype=jnp.float32)
    image_idx = jnp.repeat(
        jnp.arange(n_atoms_per_image.shape[0], dtype=jnp.int32), n_atoms_per_image
    )
    data = {
        "atomic_energy": atomic_energy,
        "image_idx": image_idx,
        "n_atoms": n_atoms_per_image,
    }

    # sum aggregation + per-atom passthrough
    out = atomwise_reduce(
        data, output_key="energy", per_atom_output=True, aggregation_mode="sum"
    )
    energy = jax.block_until_ready(out["energy"])
    ref = _reference(atomic_energy, image_idx, 2, "sum")
    assert energy.shape == (2,)
    assert jnp.allclose(energy, ref, atol=1e-5), (energy, ref)
    assert jnp.allclose(out["energy_per_atom"], atomic_energy)

    # mean aggregation
    out_mean = atomwise_reduce(data, aggregation_mode="mean")
    energy_mean = jax.block_until_ready(out_mean["energy"])
    ref_mean = _reference(atomic_energy, image_idx, 2, "mean")
    assert jnp.allclose(energy_mean, ref_mean, atol=1e-5), (energy_mean, ref_mean)

    # missing image_idx branch -> single image, like the torch code
    out_single = atomwise_reduce(
        {"atomic_energy": atomic_energy, "n_atoms": n_atoms_per_image[:1]}
    )
    e_single = jax.block_until_ready(out_single["energy"])
    assert jnp.allclose(e_single, jnp.sum(atomic_energy)[None], atol=1e-5)

    # ---- Larger batch: exercises the multi-step gridded accumulator --------
    key2, key3 = jax.random.split(jax.random.PRNGKey(0))
    n_images_big = 16
    counts_big = jax.random.randint(key2, (n_images_big,), 1000, 1500, dtype=jnp.int32)
    n_big = int(counts_big.sum())
    e_big = jax.random.normal(key3, (n_big,), dtype=jnp.float32)
    idx_big = jnp.repeat(jnp.arange(n_images_big, dtype=jnp.int32), counts_big,
                         total_repeat_length=n_big)
    data_big = {"atomic_energy": e_big, "image_idx": idx_big, "n_atoms": counts_big}

    out_big = atomwise_reduce(data_big, aggregation_mode="sum")
    e_out_big = jax.block_until_ready(out_big["energy"])
    ref_big = _reference(e_big, idx_big, n_images_big, "sum")
    assert jnp.allclose(e_out_big, ref_big, atol=1e-3, rtol=1e-5), (e_out_big, ref_big)

    out_big_mean = atomwise_reduce(data_big, aggregation_mode="mean")
    e_out_big_mean = jax.block_until_ready(out_big_mean["energy"])
    ref_big_mean = _reference(e_big, idx_big, n_images_big, "mean")
    assert jnp.allclose(e_out_big_mean, ref_big_mean, atol=1e-5), (
        e_out_big_mean,
        ref_big_mean,
    )

    print("KERNEL_OK")
</pallas_src>

<mosaic_0001>
module attributes {stable_mosaic.version = 11 : i64} {
  func.func @_atomwise_reduce_kernel(%arg0: i32, %arg1: memref<1x512xf32, #tpu.memory_space<vmem>>, %arg2: memref<1x512xi32, #tpu.memory_space<vmem>>, %arg3: memref<1x128xf32, #tpu.memory_space<vmem>>, %arg4: memref<8x1xf32, #tpu.memory_space<vmem>>) attributes {dimension_semantics = [#tpu.dimension_semantics<arbitrary>], iteration_bounds = array<i64: 1>, scalar_prefetch = 0 : i64, scratch_operands = 1 : i64, tpu.core_type = #tpu.core_type<tc>, window_params = [{transform_indices = @transform_0, window_bounds = array<i64: 1, 512>}, {transform_indices = @transform_1, window_bounds = array<i64: 1, 512>}, {pipeline_mode = #tpu.pipeline_mode<synchronous>, transform_indices = @transform_2, window_bounds = array<i64: 1, 128>}]} {
    %c0_i32 = arith.constant 0 : i32
    %0 = arith.cmpi eq, %arg0, %c0_i32 : i32
    %1 = arith.extui %0 : i1 to i32
    %c0_i32_0 = arith.constant 0 : i32
    %2 = arith.cmpi ne, %1, %c0_i32_0 : i32
    scf.if %2 {
      %cst_11 = arith.constant 0.000000e+00 : f32
      %22 = vector.broadcast %cst_11 : f32 to vector<8x1xf32>
      %c0_12 = arith.constant 0 : index
      %c0_13 = arith.constant 0 : index
      %23 = vector.load %arg4[%c0_12, %c0_13] : memref<8x1xf32, #tpu.memory_space<vmem>>, vector<8x1xf32>
      tpu.vector_store %arg4[%c0_12, %c0_13], %22 {strides = array<i32>} : memref<8x1xf32, #tpu.memory_space<vmem>>, vector<8x1xf32>,
    } else {
    }
    %c0 = arith.constant 0 : index
    %c0_1 = arith.constant 0 : index
    %3 = vector.load %arg1[%c0, %c0_1] : memref<1x512xf32, #tpu.memory_space<vmem>>, vector<1x512xf32>
    %c0_2 = arith.constant 0 : index
    %c0_3 = arith.constant 0 : index
    %4 = vector.load %arg2[%c0_2, %c0_3] : memref<1x512xi32, #tpu.memory_space<vmem>>, vector<1x512xi32>
    %5 = tpu.iota {dimensions = array<i32: 0>} : vector<8x512xi32>
    %6 = vector.broadcast %4 : vector<1x512xi32> to vector<8x512xi32>
    %7 = arith.cmpi eq, %6, %5 : vector<8x512xi32>
    %cst = arith.constant 0.000000e+00 : f32
    %8 = vector.broadcast %cst : f32 to vector<1x512xf32>
    %9 = vector.shape_cast %3 : vector<1x512xf32> to vector<1x512xf32>
    %10 = vector.broadcast %9 : vector<1x512xf32> to vector<8x512xf32>
    %11 = vector.shape_cast %8 : vector<1x512xf32> to vector<1x512xf32>
    %12 = vector.broadcast %11 : vector<1x512xf32> to vector<8x512xf32>
    %13 = arith.select %7, %10, %12 : vector<8x512xi1>, vector<8x512xf32>
    %c0_4 = arith.constant 0 : index
    %c0_5 = arith.constant 0 : index
    %14 = vector.load %arg4[%c0_4, %c0_5] : memref<8x1xf32, #tpu.memory_space<vmem>>, vector<8x1xf32>
    %cst_6 = arith.constant dense<0.000000e+00> : vector<8xf32>
    %15 = vector.multi_reduction <add>, %13, %cst_6 [1] : vector<8x512xf32> to vector<8xf32>
    %16 = vector.shape_cast %15 : vector<8xf32> to vector<8x1xf32>
    %17 = arith.addf %14, %16 : vector<8x1xf32>
    %c0_7 = arith.constant 0 : index
    %c0_8 = arith.constant 0 : index
    %18 = vector.load %arg4[%c0_7, %c0_8] : memref<8x1xf32, #tpu.memory_space<vmem>>, vector<8x1xf32>
    tpu.vector_store %arg4[%c0_7, %c0_8], %17 {strides = array<i32>} : memref<8x1xf32, #tpu.memory_space<vmem>>, vector<8x1xf32>,
    %c0_i32_9 = arith.constant 0 : i32
    %19 = arith.cmpi eq, %arg0, %c0_i32_9 : i32
    %20 = arith.extui %19 : i1 to i32
    %c0_i32_10 = arith.constant 0 : i32
    %21 = arith.cmpi ne, %20, %c0_i32_10 : i32
    scf.if %21 {
      %c0_11 = arith.constant 0 : index
      %c0_12 = arith.constant 0 : index
      %22 = vector.load %arg4[%c0_11, %c0_12] : memref<8x1xf32, #tpu.memory_space<vmem>>, vector<8x1xf32>
      %23 = tpu.iota {dimensions = array<i32: 0>} : vector<8x128xi32>
      %24 = tpu.iota {dimensions = array<i32: 1>} : vector<8x128xi32>
      %25 = arith.cmpi eq, %23, %24 : vector<8x128xi32>
      %26 = arith.extui %25 : vector<8x128xi1> to vector<8x128xi32>
      %27 = arith.sitofp %26 : vector<8x128xi32> to vector<8x128xf32>
      %28 = vector.broadcast %22 : vector<8x1xf32> to vector<8x128xf32>
      %29 = arith.mulf %28, %27 : vector<8x128xf32>
      %cst_13 = arith.constant dense<0.000000e+00> : vector<128xf32>
      %30 = vector.multi_reduction <add>, %29, %cst_13 [0] : vector<8x128xf32> to vector<128xf32>
      %31 = vector.shape_cast %30 : vector<128xf32> to vector<1x128xf32>
      %c0_14 = arith.constant 0 : index
      %c0_15 = arith.constant 0 : index
      %32 = vector.load %arg3[%c0_14, %c0_15] : memref<1x128xf32, #tpu.memory_space<vmem>>, vector<1x128xf32>
      tpu.vector_store %arg3[%c0_14, %c0_15], %31 {strides = array<i32>} : memref<1x128xf32, #tpu.memory_space<vmem>>, vector<1x128xf32>,
    } else {
    }
    return
  }
  func.func @transform_0(%arg0: i32) -> (i32, i32) {
    %c0_i32 = arith.constant 0 : i32
    %c0_i32_0 = arith.constant 0 : i32
    return %c0_i32, %arg0 : i32, i32
  }
  func.func @transform_1(%arg0: i32) -> (i32, i32) {
    %c0_i32 = arith.constant 0 : i32
    %c0_i32_0 = arith.constant 0 : i32
    return %c0_i32, %arg0 : i32, i32
  }
  func.func @transform_2(%arg0: i32) -> (i32, i32) {
    %c0_i32 = arith.constant 0 : i32
    %c0_i32_0 = arith.constant 0 : i32
    %c0_i32_1 = arith.constant 0 : i32
    return %c0_i32, %c0_i32_0 : i32, i32
  }
}

</mosaic_0001>

<llo_original>
// kernel: tpu_custom_call.1
$region0: #{tpu_custom_call.1}
  #allocation0 [shape = 'u32[]', space=smem, size = 0x4, offset = 0x4, fixed_abs, tag = 'smem constant byte address 0x4 - core index']
  #allocation1 [shape = 'u32[72,128]{1,0:T(1,128)}', space=vmem, size = 0x9000, scoped, tag = 'internal scratch']
  #allocation2 [shape = 'f32[8,1]{1,0:T(8,128)}', space=vmem, size = 0x1000, scoped, tag = 'scratch operand']
  %s0 = inlined_call_operand.hbm [shape: f32[1,512], index: 0, kind: input, shape index: {}]
  %s1 = inlined_call_operand.hbm [shape: s32[1,512], index: 1, kind: input, shape index: {}]
  %s2 = inlined_call_operand.hbm [shape: f32[1,128], index: 2, kind: output, shape index: {}]
  %s3 = sld [smem:[#allocation0]]
  $region34: #{tpu_custom_call.1} parent=0
    _
  %s5 = ssub.s32 1, %s3
  %s6 = scalar_select 0, %s5, %s3
  $region1: #{tpu_custom_call.1} parent=0
    #allocation3 [shape = 'u8[2048]{0}', space=vmem, size = 0x800, scoped, tag = 'input window, operand 0, single buffered']
    #allocation4 [shape = 's32[1]{0}', space=sflag, size = 0x4, scoped, tag = 'scoped memory for tpu_custom_call.1']
    #allocation5 [shape = 's32[1]{0}', space=sflag, size = 0x4, scoped, tag = 'scoped memory for tpu_custom_call.1']
    #allocation6 [shape = 'u8[2048]{0}', space=vmem, size = 0x800, scoped, tag = 'input window, operand 1, single buffered']
    #allocation7 [shape = 's32[1]{0}', space=sflag, size = 0x4, scoped, tag = 'scoped memory for tpu_custom_call.1']
    #allocation8 [shape = 'u8[512]{0}', space=vmem, size = 0x400, scoped, tag = 'output window, operand 0, single buffered']
    %7 = vsyncpa [#allocation4], 0
    %8 = vsyncpa [#allocation7], 0
    %9 = vsyncpa [#allocation5], 0
    // Predicated region
    $region2: #{tpu_custom_call.1} parent=1 // pred_check
      _
    $region3: #{tpu_custom_call.1} parent=1 // pred_check_branch
      %11 = sbr.rel (0) target = $region5
    $region4: #{tpu_custom_call.1} parent=1 // pred_region
      %13 = vsyncadd [#allocation4], 0
      %s15 = sshll.u32 %s0, 4
      %s16 = int_to_ptr.hbm [resolvable:$true] %s15
      %s17 = sshll.u32 [#allocation3], 4
      %s18 = int_to_ptr.vmem [resolvable:$true] %s17
      %20 = dma.hbm_to_vmem [thread:$0]  %s16, 64, %s18, [#allocation4]
    $region5: #{tpu_custom_call.1} parent=1 // pred_fallthru
      _
    // Predicated region
    $region6: #{tpu_custom_call.1} parent=1 // pred_check
      _
    $region7: #{tpu_custom_call.1} parent=1 // pred_check_branch
      %22 = sbr.rel (0) target = $region9
    $region8: #{tpu_custom_call.1} parent=1 // pred_region
      %24 = vsyncadd [#allocation7], 0
      %s26 = sshll.u32 %s1, 4
      %s27 = int_to_ptr.hbm [resolvable:$true] %s26
      %s28 = sshll.u32 [#allocation6], 4
      %s29 = int_to_ptr.vmem [resolvable:$true] %s28
      %31 = dma.hbm_to_vmem [thread:$0]  %s27, 64, %s29, [#allocation7]
    $region9: #{tpu_custom_call.1} parent=1 // pred_fallthru
      _
    // Predicated region
    $region10: #{tpu_custom_call.1} parent=1 // pred_check
      _
    $region11: #{tpu_custom_call.1} parent=1 // pred_check_branch
      %33 = sbr.rel (0) target = $region13
    $region12: #{tpu_custom_call.1} parent=1 // pred_region
      %35 = dma.done [#allocation4], 64
    $region13: #{tpu_custom_call.1} parent=1 // pred_fallthru
      _
    // Predicated region
    $region14: #{tpu_custom_call.1} parent=1 // pred_check
      _
    $region15: #{tpu_custom_call.1} parent=1 // pred_check_branch
      %37 = sbr.rel (0) target = $region17
    $region16: #{tpu_custom_call.1} parent=1 // pred_region
      %39 = dma.done [#allocation7], 64
    $region17: #{tpu_custom_call.1} parent=1 // pred_fallthru
      _
    %p40 = scmp.eq.s32.totalorder 0, 0
    // Predicated region
    $region18: #{tpu_custom_call.1} parent=1 // pred_check
      %p41 = pneg %p40
    $region19: #{tpu_custom_call.1} parent=1 // pred_check_branch
      %43 = sbr.rel (%p41) target = $region21
    $region20: #{tpu_custom_call.1} parent=1 // pred_region
      %vm44 = vcmask 7168
      %45 = vst.msk [vmem:[#allocation2] sm:$0xff] %vm44, 0.0
    $region21: #{tpu_custom_call.1} parent=1 // pred_fallthru
      _
    %v46 = vld [vmem:[#allocation3] sm:$0xf]
    %v47 = vld [vmem:[#allocation6] sm:$0xf]
    %v48 = vlaneseq
    %v49 = vshrl.u32 %v48, 7
    %v50 = vperm.slane %v47, 0
    %v51 = vperm.slane %v47, 1
    %v52 = vperm.slane %v47, 2
    %v53 = vperm.slane %v47, 3
    %vm54 = vcmp.eq.s32.totalorder %v50, %v49
    %vm55 = vcmp.eq.s32.totalorder %v51, %v49
    %vm56 = vcmp.eq.s32.totalorder %v52, %v49
    %vm57 = vcmp.eq.s32.totalorder %v53, %v49
    %v59 = vperm.slane %v46, 0
    %v60 = vperm.slane %v46, 1
    %v61 = vperm.slane %v46, 2
    %v62 = vperm.slane %v46, 3
    %v67 = vsel %vm54, %v59, 0.0
    %v68 = vsel %vm55, %v60, 0.0
    %v69 = vsel %vm56, %v61, 0.0
    %v70 = vsel %vm57, %v62, 0.0
    %v71 = vld [vmem:[#allocation2] sm:$0xff]
    %v72 = vadd.f32 %v67, %v68
    %v73 = vadd.f32 %v72, %v69
    %v74 = vadd.f32 %v73, %v70
    %75 = vadd.xlane.f32.xlu0 %v74
    %v76 = vpop.xlane.xlu0 %75
    %v77 = vadd.f32 %v71, %v76
    %vm78 = vcmask 7168
    %79 = vst.msk [vmem:[#allocation2] sm:$0xff] %vm78, %v77
    // Predicated region
    $region22: #{tpu_custom_call.1} parent=1 // pred_check
      %p80 = pneg %p40
    $region23: #{tpu_custom_call.1} parent=1 // pred_check_branch
      %82 = sbr.rel (%p80) target = $region25
    $region24: #{tpu_custom_call.1} parent=1 // pred_region
      %v83 = vld [vmem:[#allocation2] sm:$0xff]
      %v84 = vlaneseq
      %v85 = vand.u32 %v84, 127
      %vm86 = vcmp.eq.s32.totalorder %v49, %v85
      %v87 = vsel %vm86, 1, 0
      %v88 = vcvt.s32.f32 %v87
      %90 = vset.pattern.permute.xlu0 0
      %91 = vperm.xlu0 %90, %v83
      %v92 = vpop.permute.xlu0 %91
      %v94 = vmul.f32 %v92, %v88
      %v95 = vrot.slane %v94, 4
      %v96 = vadd.f32 %v94, %v95
      %v97 = vrot.slane %v96, 2
      %v98 = vadd.f32 %v96, %v97
      %v99 = vrot.slane %v98, 1
      %v100 = vadd.f32 %v98, %v99
      %101 = vst [vmem:[#allocation8] sm:$0x1] %v100
    $region25: #{tpu_custom_call.1} parent=1 // pred_fallthru
      _
    // Predicated region
    $region26: #{tpu_custom_call.1} parent=1 // pred_check
      _
    $region27: #{tpu_custom_call.1} parent=1 // pred_check_branch
      %103 = sbr.rel (0) target = $region29
    $region28: #{tpu_custom_call.1} parent=1 // pred_region
      %105 = vsyncadd [#allocation5], 0
      %s107 = sshll.u32 [#allocation8], 4
      %s108 = int_to_ptr.vmem [resolvable:$true] %s107
      %s109 = sshll.u32 %s2, 4
      %s110 = int_to_ptr.hbm [resolvable:$true] %s109
      %112 = dma.vmem_to_hbm [thread:$0]  %s108, 16, %s110, [#allocation5]
    $region29: #{tpu_custom_call.1} parent=1 // pred_fallthru
      _
    // Predicated region
    $region30: #{tpu_custom_call.1} parent=1 // pred_check
      _
    $region31: #{tpu_custom_call.1} parent=1 // pred_check_branch
      %114 = sbr.rel (0) target = $region33
    $region32: #{tpu_custom_call.1} parent=1 // pred_region
      %116 = dma.done [#allocation5], 16
    $region33: #{tpu_custom_call.1} parent=1 // pred_fallthru
      _
    %117 = vsyncpa [#allocation4], 1
    %118 = vsyncpa [#allocation7], 1
    %119 = vsyncpa [#allocation5], 1

</llo_original>
